<compile_context>
chip_gen: v6e
topology: v6e:2x2x1
jax: 0.10.0
libtpu: 0.0.40
codegen_flags: <defaults>
</compile_context>

<pallas_src>
import functools

import jax
import jax.numpy as jnp
from jax.experimental import pallas as pl
from jax.experimental.pallas import tpu as pltpu

EPS = 1e-6


def _combo_loss_kernel(logits_ref, targets_ref, out_ref,
                       inter_acc, card_acc, ce_acc,
                       *, num_classes, tile_p, hw, needs_mask):
    # logits_ref : [1, C, TILE_P]  (native float dtype, VMEM)
    # targets_ref: [1, 1, TILE_P]  int32 (VMEM)
    # out_ref    : [1, C_SUB, 128] f32 per-batch partial sums
    # scratch    : inter_acc [C, TILE_P], card_acc [C, TILE_P], ce_acc [1, TILE_P]
    t = pl.program_id(1)

    @pl.when(t == 0)
    def _init():
        inter_acc[...] = jnp.zeros_like(inter_acc)
        card_acc[...] = jnp.zeros_like(card_acc)
        ce_acc[...] = jnp.zeros_like(ce_acc)

    logits = logits_ref[0].astype(jnp.float32)          # [C, TILE_P]
    tgt = targets_ref[0]                                 # [1, TILE_P] int32

    if needs_mask:
        # Mask lanes past the true pixel count (partial last tile).
        col = jax.lax.broadcasted_iota(jnp.int32, (1, tile_p), 1)
        valid = (t * tile_p + col) < hw                   # [1, TILE_P] bool
        valid_f = valid.astype(jnp.float32)
        logits = jnp.where(valid, logits, 0.0)
        tgt = jnp.where(valid, tgt, -1)                   # never matches a class id
    else:
        valid_f = None

    # One-hot targets via class-id iota (no host-side one-hot).
    class_ids = jax.lax.broadcasted_iota(jnp.int32, (num_classes, tile_p), 0)
    onehot = (class_ids == tgt).astype(jnp.float32)       # [C, TILE_P]

    # Numerically stable softmax / log-sum-exp over the class (sublane) axis.
    m = jnp.max(logits, axis=0, keepdims=True)            # [1, TILE_P]
    e = jnp.exp(logits - m)                               # [C, TILE_P] (EUP)
    s = jnp.sum(e, axis=0, keepdims=True)                 # [1, TILE_P]
    inv_s = pl.reciprocal(s, approx=True)                 # EUP slot (nearly free)
    inv_s = inv_s * (2.0 - s * inv_s)                     # one Newton step -> ~f32 exact
    probs = e * inv_s                                     # [C, TILE_P]
    lse = m + jnp.log(s)                                  # [1, TILE_P]

    # Cross-entropy term per pixel: logsumexp - logit[target].
    logit_t = jnp.sum(logits * onehot, axis=0, keepdims=True)   # [1, TILE_P]
    ce_term = lse - logit_t

    if needs_mask:
        probs = probs * valid_f
        ce_term = ce_term * valid_f

    # Lane-wise accumulation only (pure VPU); cross-lane reduce deferred to finalize.
    inter_acc[...] += probs * onehot
    card_acc[...] += probs + onehot
    ce_acc[...] += ce_term

    @pl.when(t == pl.num_programs(1) - 1)
    def _finalize():
        inter = jnp.sum(inter_acc[...], axis=1, keepdims=True)   # [C, 1]
        card = jnp.sum(card_acc[...], axis=1, keepdims=True)     # [C, 1]
        ce = jnp.sum(ce_acc[...], axis=1, keepdims=True)          # [1, 1]
        out_ref[0, 0:num_classes, 0:1] = inter
        out_ref[0, 0:num_classes, 1:2] = card
        out_ref[0, 0:1, 2:3] = ce


def _choose_tile_p(hw, c, logit_bytes):
    """Lane-dense pixel tile sized to keep the whole working set in a few MiB."""
    budget = 6 * 1024 * 1024  # well under the default scoped VMEM on v5e/v6e/v7x
    # 2x double-buffered inputs (logits + int32 targets) + f32 scratch accumulators.
    per_pixel = 2 * (c * logit_bytes + 4) + (2 * c + 1) * 4
    tile = budget // per_pixel
    tile = max(128, (tile // 128) * 128)
    tile = min(tile, 1 << 16)
    if hw <= tile:
        return hw            # single full-axis tile is always a legal block shape
    return tile              # multiple of 128; partial last tile is masked in-kernel


def _nearest_resize_targets(targets, out_hw):
    # Glue equivalent of F.interpolate(targets.float(), size=..., mode='nearest').long()
    n, c, h, w = targets.shape
    oh, ow = out_hw
    ridx = jnp.floor(jnp.arange(oh) * (h / oh)).astype(jnp.int32)
    cidx = jnp.floor(jnp.arange(ow) * (w / ow)).astype(jnp.int32)
    return targets[:, :, ridx][:, :, :, cidx]


def combo_loss(logits, targets, weight=0.5, tile_p_override=None):
    """logits: [N, C, H, W] float (f32 or bf16); targets: [N, 1, H, W] int."""
    n, c, h, w = logits.shape
    if targets.shape[2:] != (h, w):
        targets = _nearest_resize_targets(targets, (h, w))

    hw = h * w
    logits_f = logits.reshape(n, c, hw)                       # free reshape, native dtype
    targets_f = targets.reshape(n, 1, hw).astype(jnp.int32)

    tile_p = tile_p_override or _choose_tile_p(hw, c, jnp.dtype(logits.dtype).itemsize)
    num_tiles = pl.cdiv(hw, tile_p)
    needs_mask = (hw % tile_p) != 0
    c_sub = ((c + 7) // 8) * 8                                 # sublane-aligned out rows

    kernel = functools.partial(
        _combo_loss_kernel,
        num_classes=c, tile_p=tile_p, hw=hw, needs_mask=needs_mask,
    )

    # NOTE: if DMA shows up exposed at very small C, bump the input specs to
    # pipeline_mode=pl.Buffered(3); default double-buffering is enough here.
    parts = pl.pallas_call(
        kernel,
        out_shape=jax.ShapeDtypeStruct((n, c_sub, 128), jnp.float32),
        grid_spec=pltpu.PrefetchScalarGridSpec(
            num_scalar_prefetch=0,
            grid=(n, num_tiles),
            in_specs=[
                pl.BlockSpec((1, c, tile_p), lambda b, t: (b, 0, t)),
                pl.BlockSpec((1, 1, tile_p), lambda b, t: (b, 0, t)),
            ],
            out_specs=pl.BlockSpec((1, c_sub, 128), lambda b, t: (b, 0, 0)),
            scratch_shapes=[
                pltpu.VMEM((c, tile_p), jnp.float32),   # inter_acc
                pltpu.VMEM((c, tile_p), jnp.float32),   # card_acc
                pltpu.VMEM((1, tile_p), jnp.float32),   # ce_acc
            ],
        ),
        compiler_params=pltpu.CompilerParams(
            dimension_semantics=("parallel", "arbitrary"),
        ),
    )(logits_f, targets_f)

    # Tiny per-batch partials -> final Dice + CE in plain JAX (negligible cost).
    inter = jnp.sum(parts[:, :c, 0], axis=0)                   # [C]
    card = jnp.sum(parts[:, :c, 1], axis=0)                    # [C]
    ce_sum = jnp.sum(parts[:, 0, 2])
    ce = ce_sum / float(n * hw)
    dice = jnp.mean(1.0 - (2.0 * inter + EPS) / (card + EPS))
    return weight * dice + (1.0 - weight) * ce


def _reference_combo_loss(logits, targets, weight=0.5):
    # Pure-JAX reference for sanity checking the kernel.
    n, c, h, w = logits.shape
    logits_cp = jnp.transpose(logits, (1, 0, 2, 3)).reshape(c, -1).astype(jnp.float32)
    tgt = targets.reshape(-1).astype(jnp.int32)
    onehot = jax.nn.one_hot(tgt, c, dtype=jnp.float32).T       # [C, P]
    logp = jax.nn.log_softmax(logits_cp, axis=0)
    probs = jnp.exp(logp)
    ce = -jnp.mean(jnp.sum(logp * onehot, axis=0))
    inter = jnp.sum(probs * onehot, axis=1)
    card = jnp.sum(probs, axis=1) + jnp.sum(onehot, axis=1)
    dice = jnp.mean(1.0 - (2.0 * inter + EPS) / (card + EPS))
    return weight * dice + (1.0 - weight) * ce


if __name__ == "__main__":
    key = jax.random.PRNGKey(0)

    # Test 1: small canonical shapes (single pixel tile per batch element).
    k1, k2, k3, k4 = jax.random.split(key, 4)
    N, C, H, W = 2, 4, 16, 16
    logits = jax.random.normal(k1, (N, C, H, W), dtype=jnp.float32)
    targets = jax.random.randint(k2, (N, 1, H, W), 0, C, dtype=jnp.int32)
    loss = combo_loss(logits, targets, weight=0.5)
    jax.block_until_ready(loss)
    ref = _reference_combo_loss(logits, targets, weight=0.5)
    assert jnp.allclose(loss, ref, rtol=1e-4, atol=1e-4), (loss, ref)

    # Test 2: exercise multi-tile accumulation + partial-tile masking
    # (H*W = 192, forced tile of 128 -> 2 tiles, last one masked), odd class count.
    N2, C2, H2, W2 = 2, 5, 16, 12
    logits2 = jax.random.normal(k3, (N2, C2, H2, W2), dtype=jnp.float32)
    targets2 = jax.random.randint(k4, (N2, 1, H2, W2), 0, C2, dtype=jnp.int32)
    loss2 = combo_loss(logits2, targets2, weight=0.5, tile_p_override=128)
    jax.block_until_ready(loss2)
    ref2 = _reference_combo_loss(logits2, targets2, weight=0.5)
    assert jnp.allclose(loss2, ref2, rtol=1e-4, atol=1e-4), (loss2, ref2)

    print("KERNEL_OK")
</pallas_src>

<mosaic_0001>
module attributes {stable_mosaic.version = 11 : i64} {
  func.func @_combo_loss_kernel(%arg0: i32, %arg1: i32, %arg2: memref<1x4x256xf32, #tpu.memory_space<vmem>>, %arg3: memref<1x1x256xi32, #tpu.memory_space<vmem>>, %arg4: memref<1x8x128xf32, #tpu.memory_space<vmem>>, %arg5: memref<4x256xf32, #tpu.memory_space<vmem>>, %arg6: memref<4x256xf32, #tpu.memory_space<vmem>>, %arg7: memref<1x256xf32, #tpu.memory_space<vmem>>) attributes {dimension_semantics = [#tpu.dimension_semantics<parallel>, #tpu.dimension_semantics<arbitrary>], iteration_bounds = array<i64: 2, 1>, scalar_prefetch = 0 : i64, scratch_operands = 3 : i64, tpu.core_type = #tpu.core_type<tc>, window_params = [{transform_indices = @transform_0, window_bounds = array<i64: 1, 4, 256>}, {transform_indices = @transform_1, window_bounds = array<i64: 1, 1, 256>}, {transform_indices = @transform_2, window_bounds = array<i64: 1, 8, 128>}]} {
    %c0_i32 = arith.constant 0 : i32
    %0 = arith.cmpi eq, %arg1, %c0_i32 : i32
    %1 = arith.extui %0 : i1 to i32
    %c0_i32_0 = arith.constant 0 : i32
    %2 = arith.cmpi ne, %1, %c0_i32_0 : i32
    scf.if %2 {
      %cst_23 = arith.constant 0.000000e+00 : f32
      %46 = vector.broadcast %cst_23 : f32 to vector<4x256xf32>
      %c0_24 = arith.constant 0 : index
      %c0_25 = arith.constant 0 : index
      %47 = vector.load %arg5[%c0_24, %c0_25] : memref<4x256xf32, #tpu.memory_space<vmem>>, vector<4x256xf32>
      tpu.vector_store %arg5[%c0_24, %c0_25], %46 {strides = array<i32>} : memref<4x256xf32, #tpu.memory_space<vmem>>, vector<4x256xf32>,
      %cst_26 = arith.constant 0.000000e+00 : f32
      %48 = vector.broadcast %cst_26 : f32 to vector<4x256xf32>
      %c0_27 = arith.constant 0 : index
      %c0_28 = arith.constant 0 : index
      %49 = vector.load %arg6[%c0_27, %c0_28] : memref<4x256xf32, #tpu.memory_space<vmem>>, vector<4x256xf32>
      tpu.vector_store %arg6[%c0_27, %c0_28], %48 {strides = array<i32>} : memref<4x256xf32, #tpu.memory_space<vmem>>, vector<4x256xf32>,
      %cst_29 = arith.constant 0.000000e+00 : f32
      %50 = vector.broadcast %cst_29 : f32 to vector<1x256xf32>
      %c0_30 = arith.constant 0 : index
      %c0_31 = arith.constant 0 : index
      %51 = vector.load %arg7[%c0_30, %c0_31] : memref<1x256xf32, #tpu.memory_space<vmem>>, vector<1x256xf32>
      tpu.vector_store %arg7[%c0_30, %c0_31], %50 {strides = array<i32>} : memref<1x256xf32, #tpu.memory_space<vmem>>, vector<1x256xf32>,
    } else {
    }
    %c0 = arith.constant 0 : index
    %c0_1 = arith.constant 0 : index
    %c0_2 = arith.constant 0 : index
    %3 = vector.load %arg2[%c0, %c0_1, %c0_2] : memref<1x4x256xf32, #tpu.memory_space<vmem>>, vector<1x4x256xf32>
    %4 = vector.shape_cast %3 : vector<1x4x256xf32> to vector<4x256xf32>
    %c0_3 = arith.constant 0 : index
    %c0_4 = arith.constant 0 : index
    %c0_5 = arith.constant 0 : index
    %5 = vector.load %arg3[%c0_3, %c0_4, %c0_5] : memref<1x1x256xi32, #tpu.memory_space<vmem>>, vector<1x1x256xi32>
    %6 = vector.shape_cast %5 : vector<1x1x256xi32> to vector<1x256xi32>
    %7 = tpu.iota {dimensions = array<i32: 0>} : vector<4x256xi32>
    %8 = vector.broadcast %6 : vector<1x256xi32> to vector<4x256xi32>
    %9 = arith.cmpi eq, %7, %8 : vector<4x256xi32>
    %10 = arith.extui %9 : vector<4x256xi1> to vector<4x256xi32>
    %11 = arith.sitofp %10 : vector<4x256xi32> to vector<4x256xf32>
    %cst = arith.constant dense<0xFF800000> : vector<256xf32>
    %12 = vector.multi_reduction <maximumf>, %4, %cst [0] : vector<4x256xf32> to vector<256xf32>
    %13 = vector.shape_cast %12 : vector<256xf32> to vector<1x256xf32>
    %14 = vector.broadcast %13 : vector<1x256xf32> to vector<4x256xf32>
    %15 = arith.subf %4, %14 : vector<4x256xf32>
    %16 = math.exp %15 : vector<4x256xf32>
    %cst_6 = arith.constant dense<0.000000e+00> : vector<256xf32>
    %17 = vector.multi_reduction <add>, %16, %cst_6 [0] : vector<4x256xf32> to vector<256xf32>
    %18 = vector.shape_cast %17 : vector<256xf32> to vector<1x256xf32>
    %19 = tpu.reciprocal %18 {approx = true} : vector<1x256xf32> -> vector<1x256xf32>
    %20 = arith.mulf %18, %19 : vector<1x256xf32>
    %cst_7 = arith.constant 2.000000e+00 : f32
    %21 = vector.broadcast %cst_7 : f32 to vector<1x256xf32>
    %22 = arith.subf %21, %20 : vector<1x256xf32>
    %23 = arith.mulf %19, %22 : vector<1x256xf32>
    %24 = vector.broadcast %23 : vector<1x256xf32> to vector<4x256xf32>
    %25 = arith.mulf %16, %24 : vector<4x256xf32>
    %26 = math.log %18 : vector<1x256xf32>
    %27 = arith.addf %13, %26 : vector<1x256xf32>
    %28 = arith.mulf %4, %11 : vector<4x256xf32>
    %cst_8 = arith.constant dense<0.000000e+00> : vector<256xf32>
    %29 = vector.multi_reduction <add>, %28, %cst_8 [0] : vector<4x256xf32> to vector<256xf32>
    %30 = vector.shape_cast %29 : vector<256xf32> to vector<1x256xf32>
    %31 = arith.subf %27, %30 : vector<1x256xf32>
    %c0_9 = arith.constant 0 : index
    %c0_10 = arith.constant 0 : index
    %32 = vector.load %arg5[%c0_9, %c0_10] : memref<4x256xf32, #tpu.memory_space<vmem>>, vector<4x256xf32>
    %33 = arith.mulf %25, %11 : vector<4x256xf32>
    %34 = arith.addf %32, %33 : vector<4x256xf32>
    %c0_11 = arith.constant 0 : index
    %c0_12 = arith.constant 0 : index
    %35 = vector.load %arg5[%c0_11, %c0_12] : memref<4x256xf32, #tpu.memory_space<vmem>>, vector<4x256xf32>
    tpu.vector_store %arg5[%c0_11, %c0_12], %34 {strides = array<i32>} : memref<4x256xf32, #tpu.memory_space<vmem>>, vector<4x256xf32>,
    %c0_13 = arith.constant 0 : index
    %c0_14 = arith.constant 0 : index
    %36 = vector.load %arg6[%c0_13, %c0_14] : memref<4x256xf32, #tpu.memory_space<vmem>>, vector<4x256xf32>
    %37 = arith.addf %25, %11 : vector<4x256xf32>
    %38 = arith.addf %36, %37 : vector<4x256xf32>
    %c0_15 = arith.constant 0 : index
    %c0_16 = arith.constant 0 : index
    %39 = vector.load %arg6[%c0_15, %c0_16] : memref<4x256xf32, #tpu.memory_space<vmem>>, vector<4x256xf32>
    tpu.vector_store %arg6[%c0_15, %c0_16], %38 {strides = array<i32>} : memref<4x256xf32, #tpu.memory_space<vmem>>, vector<4x256xf32>,
    %c0_17 = arith.constant 0 : index
    %c0_18 = arith.constant 0 : index
    %40 = vector.load %arg7[%c0_17, %c0_18] : memref<1x256xf32, #tpu.memory_space<vmem>>, vector<1x256xf32>
    %41 = arith.addf %40, %31 : vector<1x256xf32>
    %c0_19 = arith.constant 0 : index
    %c0_20 = arith.constant 0 : index
    %42 = vector.load %arg7[%c0_19, %c0_20] : memref<1x256xf32, #tpu.memory_space<vmem>>, vector<1x256xf32>
    tpu.vector_store %arg7[%c0_19, %c0_20], %41 {strides = array<i32>} : memref<1x256xf32, #tpu.memory_space<vmem>>, vector<1x256xf32>,
    %c0_i32_21 = arith.constant 0 : i32
    %43 = arith.cmpi eq, %arg1, %c0_i32_21 : i32
    %44 = arith.extui %43 : i1 to i32
    %c0_i32_22 = arith.constant 0 : i32
    %45 = arith.cmpi ne, %44, %c0_i32_22 : i32
    scf.if %45 {
      %c0_23 = arith.constant 0 : index
      %c0_24 = arith.constant 0 : index
      %46 = vector.load %arg5[%c0_23, %c0_24] : memref<4x256xf32, #tpu.memory_space<vmem>>, vector<4x256xf32>
      %cst_25 = arith.constant dense<0.000000e+00> : vector<4xf32>
      %47 = vector.multi_reduction <add>, %46, %cst_25 [1] : vector<4x256xf32> to vector<4xf32>
      %48 = vector.shape_cast %47 : vector<4xf32> to vector<4x1xf32>
      %c0_26 = arith.constant 0 : index
      %c0_27 = arith.constant 0 : index
      %49 = vector.load %arg6[%c0_26, %c0_27] : memref<4x256xf32, #tpu.memory_space<vmem>>, vector<4x256xf32>
      %cst_28 = arith.constant dense<0.000000e+00> : vector<4xf32>
      %50 = vector.multi_reduction <add>, %49, %cst_28 [1] : vector<4x256xf32> to vector<4xf32>
      %51 = vector.shape_cast %50 : vector<4xf32> to vector<4x1xf32>
      %c0_29 = arith.constant 0 : index
      %c0_30 = arith.constant 0 : index
      %52 = vector.load %arg7[%c0_29, %c0_30] : memref<1x256xf32, #tpu.memory_space<vmem>>, vector<1x256xf32>
      %cst_31 = arith.constant dense<0.000000e+00> : vector<1xf32>
      %53 = vector.multi_reduction <add>, %52, %cst_31 [1] : vector<1x256xf32> to vector<1xf32>
      %54 = vector.shape_cast %53 : vector<1xf32> to vector<1x1xf32>
      %c0_32 = arith.constant 0 : index
      %c0_33 = arith.constant 0 : index
      %c0_34 = arith.constant 0 : index
      %55 = vector.load %arg4[%c0_32, %c0_33, %c0_34] : memref<1x8x128xf32, #tpu.memory_space<vmem>>, vector<1x4x1xf32>
      %56 = vector.shape_cast %55 : vector<1x4x1xf32> to vector<4x1xf32>
      %57 = vector.shape_cast %48 : vector<4x1xf32> to vector<1x4x1xf32>
      tpu.vector_store %arg4[%c0_32, %c0_33, %c0_34], %57 {strides = array<i32>} : memref<1x8x128xf32, #tpu.memory_space<vmem>>, vector<1x4x1xf32>,
      %c0_35 = arith.constant 0 : index
      %c0_36 = arith.constant 0 : index
      %c1 = arith.constant 1 : index
      %58 = vector.load %arg4[%c0_35, %c0_36, %c1] : memref<1x8x128xf32, #tpu.memory_space<vmem>>, vector<1x4x1xf32>
      %59 = vector.shape_cast %58 : vector<1x4x1xf32> to vector<4x1xf32>
      %60 = vector.shape_cast %51 : vector<4x1xf32> to vector<1x4x1xf32>
      tpu.vector_store %arg4[%c0_35, %c0_36, %c1], %60 {strides = array<i32>} : memref<1x8x128xf32, #tpu.memory_space<vmem>>, vector<1x4x1xf32>,
      %c0_37 = arith.constant 0 : index
      %c0_38 = arith.constant 0 : index
      %c2 = arith.constant 2 : index
      %61 = vector.load %arg4[%c0_37, %c0_38, %c2] : memref<1x8x128xf32, #tpu.memory_space<vmem>>, vector<1x1x1xf32>
      %62 = vector.shape_cast %61 : vector<1x1x1xf32> to vector<1x1xf32>
      %63 = vector.shape_cast %54 : vector<1x1xf32> to vector<1x1x1xf32>
      tpu.vector_store %arg4[%c0_37, %c0_38, %c2], %63 {strides = array<i32>} : memref<1x8x128xf32, #tpu.memory_space<vmem>>, vector<1x1x1xf32>,
    } else {
    }
    return
  }
  func.func @transform_0(%arg0: i32, %arg1: i32) -> (i32, i32, i32) {
    %c0_i32 = arith.constant 0 : i32
    %c0_i32_0 = arith.constant 0 : i32
    return %arg0, %c0_i32, %arg1 : i32, i32, i32
  }
  func.func @transform_1(%arg0: i32, %arg1: i32) -> (i32, i32, i32) {
    %c0_i32 = arith.constant 0 : i32
    %c0_i32_0 = arith.constant 0 : i32
    return %arg0, %c0_i32, %arg1 : i32, i32, i32
  }
  func.func @transform_2(%arg0: i32, %arg1: i32) -> (i32, i32, i32) {
    %c0_i32 = arith.constant 0 : i32
    %c0_i32_0 = arith.constant 0 : i32
    %c0_i32_1 = arith.constant 0 : i32
    return %arg0, %c0_i32, %c0_i32_0 : i32, i32, i32
  }
}

</mosaic_0001>

<llo_original>
// kernel: tpu_custom_call.1
$region0: #{tpu_custom_call.1}
  #allocation0 [shape = 'u32[]', space=smem, size = 0x4, offset = 0x4, fixed_abs, tag = 'smem constant byte address 0x4 - core index']
  #allocation1 [shape = 'u32[144,128]{1,0:T(1,128)}', space=vmem, size = 0x12000, scoped, tag = 'internal scratch']
  #allocation2 [shape = 'f32[4,256]{1,0:T(4,128)}', space=vmem, size = 0x1000, scoped, tag = 'scratch operand']
  #allocation3 [shape = 'f32[4,256]{1,0:T(4,128)}', space=vmem, size = 0x1000, scoped, tag = 'scratch operand']
  #allocation4 [shape = 'f32[1,256]{1,0:T(1,128)}', space=vmem, size = 0x400, scoped, tag = 'scratch operand']
  %s0 = inlined_call_operand.hbm [shape: f32[2,4,256], index: 0, kind: input, shape index: {}]
  %s1 = inlined_call_operand.hbm [shape: s32[2,1,256], index: 1, kind: input, shape index: {}]
  %s2 = inlined_call_operand.hbm [shape: f32[2,8,128], index: 2, kind: output, shape index: {}]
  %s3 = sld [smem:[#allocation0]]
  $region57: #{tpu_custom_call.1} parent=0
    _
  %s5 = ssub.s32 1, %s3
  %s6 = scalar_select 0, %s5, %s3
  $region1: #{tpu_custom_call.1} parent=0
    #allocation5 [shape = 'u8[8192]{0}', space=vmem, size = 0x2000, scoped, tag = 'input window, operand 0']
    #allocation6 [shape = 's32[2]{0}', space=sflag, size = 0x8, scoped, tag = 'scoped memory for tpu_custom_call.1']
    #allocation7 [shape = 's32[2]{0}', space=sflag, size = 0x8, scoped, tag = 'scoped memory for tpu_custom_call.1']
    #allocation8 [shape = 'u8[2048]{0}', space=vmem, size = 0x800, scoped, tag = 'input window, operand 1']
    #allocation9 [shape = 's32[2]{0}', space=sflag, size = 0x8, scoped, tag = 'scoped memory for tpu_custom_call.1']
    #allocation10 [shape = 'u8[8192]{0}', space=vmem, size = 0x2000, scoped, tag = 'output window, operand 0']
    %7 = vsyncpa [#allocation6], 0
    %s8 = scalar_lea.sflag [#allocation6], 1
    %9 = vsyncpa %s8, 0
    %10 = vsyncpa [#allocation9], 0
    %s11 = scalar_lea.sflag [#allocation9], 1
    %12 = vsyncpa %s11, 0
    %13 = vsyncpa [#allocation7], 0
    %s14 = scalar_lea.sflag [#allocation7], 1
    %15 = vsyncpa %s14, 0
    loop: start=0, step=1, limit=4
    $region2: #{tpu_custom_call.1} parent=1 // loop_pre_header
      _
    $region3: #{tpu_custom_call.1} parent=1 // loop_header
      %s17 = sphi 0, %s21
      %p18 = scmp.ge.s32.totalorder %s17, 4
      %s24 = sphi 0, %s36
      %s25 = sphi 0, %s32
      %s26 = sphi 0, %s24
      %s27 = sphi 0, %s25
      %s28 = sphi 0, %s26
      %s29 = sphi 0, %s27
      %s41 = sphi 0, %s43
      %s44 = sphi 0, %s41
      %s45 = sphi 0, %s44
      %s61 = sphi 0, %s45
      %s69 = sphi 0, %s71
      %s72 = sphi 0, %s69
      %s73 = sphi 0, %s72
      %s89 = sphi 0, %s73
      %s95 = sphi 0, %s97
      %s98 = sphi 0, %s95
      %s99 = sphi 0, %s98
      %s115 = sphi 0, %s99
    $region4: #{tpu_custom_call.1} parent=1 // loop_header_branch
      %20 = sbr.rel (%p18) target = $region8
    $region5: #{tpu_custom_call.1} parent=1 // loop_body
      %s22 = ssub.s32 %s17, 1
      %s23 = ssub.s32 %s17, 2
      %s30 = sadd.s32 1, %s25
      %p31 = scmp.ge.s32.totalorder %s30, 1
      %s32 = scalar_select %p31, 0, %s30
      %s33 = sadd.s32 1, %s24
      %s34 = scalar_select %p31, %s33, %s24
      %p35 = scmp.ge.s32.totalorder %s34, 2
      %s36 = scalar_select %p35, 0, %s34
      %s37 = ssub.s32 %s24, %s36
      %s38 = ssub.s32 %s25, %s32
      %s39 = sor.u32 %s37, %s38
      %p40 = scmp.eq.s32.totalorder %s39, 0
      %s42 = sadd.s32 %s41, 1
      %s43 = scalar_select %p40, %s41, %s42
      %p46 = pneg %p40
      %p47 = scmp.eq.s32.totalorder %s17, 1
      %p48 = por %p46, %p47
      %p49 = scmp.ne.s32.totalorder %s41, %s44
      %p50 = scmp.eq.s32.totalorder %s17, 0
      %p51 = por %p49, %p50
      %p52 = scmp.ne.s32.totalorder %s41, %s44
      %p53 = scmp.eq.s32.totalorder %s22, 1
      %p54 = por %p52, %p53
      %p55 = scmp.ne.s32.totalorder %s44, %s45
      %p56 = scmp.eq.s32.totalorder %s22, 0
      %p57 = por %p55, %p56
      %p58 = scmp.ne.s32.totalorder %s44, %s45
      %p59 = scmp.eq.s32.totalorder %s23, 1
      %p60 = por %p58, %p59
      %p62 = scmp.ne.s32.totalorder %s45, %s61
      %p63 = scmp.eq.s32.totalorder %s23, 0
      %p64 = por %p62, %p63
      %s65 = ssub.s32 %s24, %s36
      %s66 = ssub.s32 %s25, %s32
      %s67 = sor.u32 %s65, %s66
      %p68 = scmp.eq.s32.totalorder %s67, 0
      %s70 = sadd.s32 %s69, 1
      %s71 = scalar_select %p68, %s69, %s70
      %p74 = pneg %p68
      %p75 = scmp.eq.s32.totalorder %s17, 1
      %p76 = por %p74, %p75
      %p77 = scmp.ne.s32.totalorder %s69, %s72
      %p78 = scmp.eq.s32.totalorder %s17, 0
      %p79 = por %p77, %p78
      %p80 = scmp.ne.s32.totalorder %s69, %s72
      %p81 = scmp.eq.s32.totalorder %s22, 1
      %p82 = por %p80, %p81
      %p83 = scmp.ne.s32.totalorder %s72, %s73
      %p84 = scmp.eq.s32.totalorder %s22, 0
      %p85 = por %p83, %p84
      %p86 = scmp.ne.s32.totalorder %s72, %s73
      %p87 = scmp.eq.s32.totalorder %s23, 1
      %p88 = por %p86, %p87
      %p90 = scmp.ne.s32.totalorder %s73, %s89
      %p91 = scmp.eq.s32.totalorder %s23, 0
      %p92 = por %p90, %p91
      %s93 = ssub.s32 %s24, %s36
      %p94 = scmp.eq.s32.totalorder %s93, 0
      %s96 = sadd.s32 %s95, 1
      %s97 = scalar_select %p94, %s95, %s96
      %p100 = pneg %p94
      %p101 = scmp.eq.s32.totalorder %s17, 1
      %p102 = por %p100, %p101
      %p103 = scmp.ne.s32.totalorder %s95, %s98
      %p104 = scmp.eq.s32.totalorder %s17, 0
      %p105 = por %p103, %p104
      %p106 = scmp.ne.s32.totalorder %s95, %s98
      %p107 = scmp.eq.s32.totalorder %s22, 1
      %p108 = por %p106, %p107
      %p109 = scmp.ne.s32.totalorder %s98, %s99
      %p110 = scmp.eq.s32.totalorder %s22, 0
      %p111 = por %p109, %p110
      %p112 = scmp.ne.s32.totalorder %s98, %s99
      %p113 = scmp.eq.s32.totalorder %s23, 1
      %p114 = por %p112, %p113
      %p116 = scmp.ne.s32.totalorder %s99, %s115
      %p117 = scmp.eq.s32.totalorder %s23, 0
      %p118 = por %p116, %p117
      %p119 = scmp.le.s32.totalorder 1, %s17
      %p120 = scmp.lt.s32.totalorder %s17, 3
      %p121 = pnand %p119, %p120
      %p122 = pneg %p121
      // Predicated region
      $region9: #{tpu_custom_call.1} parent=5 // pred_check
        _
      $region10: #{tpu_custom_call.1} parent=5 // pred_check_branch
        %124 = sbr.rel (%p121) target = $region12
      $region11: #{tpu_custom_call.1} parent=5 // pred_region
        %s125 = ssub.s32 %s17, 1
      $region12: #{tpu_custom_call.1} parent=5 // pred_fallthru
        _
      %p126 = scmp.lt.s32.totalorder %s17, 2
      // Predicated region
      $region13: #{tpu_custom_call.1} parent=5 // pred_check
        %p127 = pneg %p126
      $region14: #{tpu_custom_call.1} parent=5 // pred_check_branch
        %129 = sbr.rel (%p127) target = $region16
      $region15: #{tpu_custom_call.1} parent=5 // pred_region
        // Predicated region
        $region17: #{tpu_custom_call.1} parent=15 // pred_check
          %p130 = pneg %p51
        $region18: #{tpu_custom_call.1} parent=15 // pred_check_branch
          %132 = sbr.rel (%p130) target = $region20
        $region19: #{tpu_custom_call.1} parent=15 // pred_region
          %s133 = sand.u32 %s41, 1
          %s134 = scalar_lea.sflag [#allocation6], %s133
          %s135 = sand.u32 %s41, 1
          %s136 = smul.addr %s135, 8
          %s137 = scalar_lea.vmem [#allocation5], %s136
          %s138 = smul.u32 2, %s25
          %s140 = ssub.s32 128, 128
          %141 = vsyncadd %s134, %s140
          %s142 = smul.addr %s24, 2
          %s143 = sadd.s32 %s138, %s142
          %s144 = smul.addr %s143, 64
          %s145 = scalar_lea.hbm %s0, %s144
          %s147 = sshll.u32 %s137, 4
          %s148 = int_to_ptr.vmem [resolvable:$true] %s147
          %150 = dma.hbm_to_vmem [thread:$0]  %s145, 128, %s148, %s134
        $region20: #{tpu_custom_call.1} parent=15 // pred_fallthru
          _
        // Predicated region
        $region21: #{tpu_custom_call.1} parent=15 // pred_check
          %p151 = pneg %p79
        $region22: #{tpu_custom_call.1} parent=15 // pred_check_branch
          %153 = sbr.rel (%p151) target = $region24
        $region23: #{tpu_custom_call.1} parent=15 // pred_region
          %s154 = sand.u32 %s69, 1
          %s155 = scalar_lea.sflag [#allocation9], %s154
          %s156 = sand.u32 %s69, 1
          %s157 = smul.addr %s156, 2
          %s158 = scalar_lea.vmem [#allocation8], %s157
          %s159 = smul.u32 2, %s25
          %s161 = ssub.s32 32, 32
          %162 = vsyncadd %s155, %s161
          %s163 = smul.addr %s24, 2
          %s164 = sadd.s32 %s159, %s163
          %s165 = smul.addr %s164, 16
          %s166 = scalar_lea.hbm %s1, %s165
          %s168 = sshll.u32 %s158, 4
          %s169 = int_to_ptr.vmem [resolvable:$true] %s168
          %171 = dma.hbm_to_vmem [thread:$0]  %s166, 32, %s169, %s155
        $region24: #{tpu_custom_call.1} parent=15 // pred_fallthru
          _
      $region16: #{tpu_custom_call.1} parent=5 // pred_fallthru
        _
      %p172 = scmp.le.s32.totalorder 1, %s17
      %p173 = scmp.lt.s32.totalorder %s17, 3
      %p174 = pnand %p172, %p173
      %p175 = pneg %p174
      // Predicated region
      $region25: #{tpu_custom_call.1} parent=5 // pred_check
        _
      $region26: #{tpu_custom_call.1} parent=5 // pred_check_branch
        %177 = sbr.rel (%p174) target = $region28
      $region27: #{tpu_custom_call.1} parent=5 // pred_region
        %s178 = ssub.s32 %s17, 1
        %s179 = sand.u32 %s44, 1
        %s180 = scalar_lea.sflag [#allocation6], %s179
        %s181 = sand.u32 %s44, 1
        %s182 = smul.addr %s181, 8
        %s183 = scalar_lea.vmem [#allocation5], %s182
        // Predicated region
        $region29: #{tpu_custom_call.1} parent=27 // pred_check
          %p184 = pneg %p57
        $region30: #{tpu_custom_call.1} parent=27 // pred_check_branch
          %186 = sbr.rel (%p184) target = $region32
        $region31: #{tpu_custom_call.1} parent=27 // pred_region
          %187 = dma.done %s180, 128
        $region32: #{tpu_custom_call.1} parent=27 // pred_fallthru
          _
        %s188 = sand.u32 %s72, 1
        %s189 = scalar_lea.sflag [#allocation9], %s188
        %s190 = sand.u32 %s72, 1
        %s191 = smul.addr %s190, 2
        %s192 = scalar_lea.vmem [#allocation8], %s191
        // Predicated region
        $region33: #{tpu_custom_call.1} parent=27 // pred_check
          %p193 = pneg %p85
        $region34: #{tpu_custom_call.1} parent=27 // pred_check_branch
          %195 = sbr.rel (%p193) target = $region36
        $region35: #{tpu_custom_call.1} parent=27 // pred_region
          %196 = dma.done %s189, 32
        $region36: #{tpu_custom_call.1} parent=27 // pred_fallthru
          _
        %s197 = sand.u32 %s44, 1
        %s198 = scalar_lea.sflag [#allocation6], %s197
        %s199 = sand.u32 %s44, 1
        %s200 = smul.addr %s199, 8
        %s201 = scalar_lea.vmem [#allocation5], %s200
        %p202 = pneg %p57
        %p203 = pneg %p54
        %s204 = sand.u32 %s72, 1
        %s205 = scalar_lea.sflag [#allocation9], %s204
        %s206 = sand.u32 %s72, 1
        %s207 = smul.addr %s206, 2
        %s208 = scalar_lea.vmem [#allocation8], %s207
        %p209 = pneg %p85
        %p210 = pneg %p82
        %p211 = pneg %p111
        %p212 = pneg %p108
        %s213 = sand.u32 %s98, 1
        %s214 = scalar_lea.sflag [#allocation7], %s213
        %s215 = sand.u32 %s98, 1
        %s216 = smul.addr %s215, 8
        %s217 = scalar_lea.vmem [#allocation10], %s216
        %s218 = smul.u32 2, %s27
        %s219 = smul.u32 2, %s27
        %p220 = scmp.eq.s32.totalorder %s27, 0
        // Predicated region
        $region37: #{tpu_custom_call.1} parent=27 // pred_check
          %p221 = pneg %p220
        $region38: #{tpu_custom_call.1} parent=27 // pred_check_branch
          %223 = sbr.rel (%p221) target = $region40
        $region39: #{tpu_custom_call.1} parent=27 // pred_region
          %224 = vst [vmem:[#allocation2] sm:$0xff] 0.0
          %225 = vst [vmem:[#allocation3] sm:$0xff] 0.0
          %v226 = vlaneseq
          %vm227 = vcmp.ge.s32.totalorder %v226, 0
          %vm228 = vcmp.lt.s32.totalorder %v226, 256
          %vm229 = vmand %vm227, %vm228
          %230 = vst.msk [vmem:[#allocation4] sm:$0x3] %vm229, 0.0
        $region40: #{tpu_custom_call.1} parent=27 // pred_fallthru
          _
        %v231 = vld [vmem:[%s183] sm:$0xff]
        %v232 = vld [vmem:[%s192] sm:$0x3]
        %v233 = vlaneseq
        %v234 = vshrl.u32 %v233, 7
        %v235 = vlaneseq
        %v236 = vshrl.u32 %v235, 7
        %v237 = vsub.s32 0, %v236
        %v238 = vrot.slane %v232, %v237
        %v239 = vlaneseq
        %v240 = vshrl.u32 %v239, 7
        %v241 = vsub.s32 1, %v240
        %v242 = vrot.slane %v232, %v241
        %vm243 = vcmp.eq.s32.totalorder %v234, %v238
        %vm244 = vcmp.eq.s32.totalorder %v234, %v242
        %v245 = vsel %vm243, 1, 0
        %v246 = vsel %vm244, 1, 0
        %v247 = vcvt.s32.f32 %v245
        %v248 = vcvt.s32.f32 %v246
        %v250 = vcombine.high %v231, %v231
        %vm252 = vcmask 1043456
        %v253 = vsel %vm252, %v231, -inf
        %v254 = vrot.slane %v253, 4
        %v255 = vmax.f32 %v253, %v254
        %v256 = vrot.slane %v255, 2
        %v257 = vmax.f32 %v255, %v256
        %v258 = vrot.slane %v257, 1
        %v259 = vmax.f32 %v257, %v258
        %v260 = vsel %vm252, %v250, -inf
        %v261 = vrot.slane %v260, 4
        %v262 = vmax.f32 %v260, %v261
        %v263 = vrot.slane %v262, 2
        %v264 = vmax.f32 %v262, %v263
        %v265 = vrot.slane %v264, 1
        %v266 = vmax.f32 %v264, %v265
        %v269 = vcombine.low %v259, %v266
        %v271 = vsub.f32 %v231, %v269
        %v272 = vmul.f32 %v271, 1.442695
        %v273 = vpow.pop %v272
        %v275 = vcombine.high %v273, %v273
        %v277 = vsel %vm252, %v273, 0.0
        %v278 = vrot.slane %v277, 4
        %v279 = vadd.f32 %v277, %v278
        %v280 = vrot.slane %v279, 2
        %v281 = vadd.f32 %v279, %v280
        %v282 = vrot.slane %v281, 1
        %v283 = vadd.f32 %v281, %v282
        %v284 = vsel %vm252, %v275, 0.0
        %v285 = vrot.slane %v284, 4
        %v286 = vadd.f32 %v284, %v285
        %v287 = vrot.slane %v286, 2
        %v288 = vadd.f32 %v286, %v287
        %v289 = vrot.slane %v288, 1
        %v290 = vadd.f32 %v288, %v289
        %v291 = vrcp.pop %v283
        %v292 = vrcp.pop %v290
        %v293 = vmul.f32 %v283, %v291
        %v294 = vmul.f32 %v290, %v292
        %v295 = vsub.f32 2.0, %v293
        %v296 = vsub.f32 2.0, %v294
        %v297 = vmul.f32 %v291, %v295
        %v298 = vmul.f32 %v292, %v296
        %v301 = vcombine.low %v297, %v298
        %v303 = vmul.f32 %v273, %v301
        %v304 = vlog2.pop %v283
        %v305 = vmul.f32 %v304, 0.6931472
        %v306 = vlog2.pop %v290
        %v307 = vmul.f32 %v306, 0.6931472
        %v308 = vadd.f32 %v259, %v305
        %v309 = vadd.f32 %v266, %v307
        %v312 = vcombine.low %v247, %v248
        %v314 = vmul.f32 %v231, %v312
        %v316 = vcombine.high %v314, %v314
        %v318 = vsel %vm252, %v314, 0.0
        %v319 = vrot.slane %v318, 4
        %v320 = vadd.f32 %v318, %v319
        %v321 = vrot.slane %v320, 2
        %v322 = vadd.f32 %v320, %v321
        %v323 = vrot.slane %v322, 1
        %v324 = vadd.f32 %v322, %v323
        %v325 = vsel %vm252, %v316, 0.0
        %v326 = vrot.slane %v325, 4
        %v327 = vadd.f32 %v325, %v326
        %v328 = vrot.slane %v327, 2
        %v329 = vadd.f32 %v327, %v328
        %v330 = vrot.slane %v329, 1
        %v331 = vadd.f32 %v329, %v330
        %v332 = vsub.f32 %v308, %v324
        %v333 = vsub.f32 %v309, %v331
        %v334 = vld [vmem:[#allocation2] sm:$0xff]
        %v335 = vmul.f32 %v303, %v312
        %v336 = vadd.f32 %v334, %v335
        %337 = vst [vmem:[#allocation2] sm:$0xff] %v336
        %v338 = vld [vmem:[#allocation3] sm:$0xff]
        %v339 = vadd.f32 %v303, %v312
        %v340 = vadd.f32 %v338, %v339
        %341 = vst [vmem:[#allocation3] sm:$0xff] %v340
        %v342 = vld [vmem:[#allocation4] sm:$0x3]
        %v345 = vcombine.low %v332, %v333
        %v347 = vunpack.c.l.s4 1966171168
        %v348 = vunpack.c.0.s8 %v347
        %v349 = vlaneseq
        %v350 = vshrl.u32 %v349, 7
        %v351 = vsub.s32 %v348, %v350
        %v352 = vrot.slane %v345, %v351
        %v354 = vunpack.c.l.s4 1966171168
        %v355 = vunpack.c.0.s8 %v354
        %v356 = vlaneseq
        %v357 = vshrl.u32 %v356, 7
        %v358 = vsub.s32 %v355, %v357
        %v359 = vrot.slane %v352, %v358
        %v361 = vadd.f32 %v342, %v359
        %v362 = vlaneseq
        %vm363 = vcmp.ge.s32.totalorder %v362, 0
        %vm364 = vcmp.lt.s32.totalorder %v362, 256
        %vm365 = vmand %vm363, %vm364
        %366 = vst.msk [vmem:[#allocation4] sm:$0x3] %vm365, %v361
        // Predicated region
        $region41: #{tpu_custom_call.1} parent=27 // pred_check
          %p367 = pneg %p220
        $region42: #{tpu_custom_call.1} parent=27 // pred_check_branch
          %369 = sbr.rel (%p367) target = $region44
        $region43: #{tpu_custom_call.1} parent=27 // pred_region
          %v370 = vld [vmem:[#allocation2] sm:$0xff]
          %v372 = vcombine.high %v370, %v370
          %v374 = vsel %vm252, %v370, 0.0
          %v375 = vsel %vm252, %v372, 0.0
          %v376 = vadd.f32 %v374, %v375
          %377 = vadd.xlane.f32.xlu0 %v376
          %v378 = vpop.xlane.xlu0 %377
          %v379 = vld [vmem:[#allocation3] sm:$0xff]
          %v381 = vcombine.high %v379, %v379
          %v383 = vsel %vm252, %v379, 0.0
          %v384 = vsel %vm252, %v381, 0.0
          %v385 = vadd.f32 %v383, %v384
          %386 = vadd.xlane.f32.xlu0 %v385
          %v387 = vpop.xlane.xlu0 %386
          %v388 = vld [vmem:[#allocation4] sm:$0x3]
          %v390 = vlaneseq
          %v391 = vshrl.u32 %v390, 7
          %v392 = vsub.s32 0, %v391
          %v393 = vrot.slane %v388, %v392
          %v394 = vlaneseq
          %v395 = vshrl.u32 %v394, 7
          %v396 = vsub.s32 1, %v395
          %v397 = vrot.slane %v388, %v396
          %vm400 = vcmask 1040384
          %v401 = vsel %vm400, %v393, 0.0
          %v402 = vsel %vm400, %v397, 0.0
          %v403 = vadd.f32 %v401, %v402
          %404 = vadd.xlane.f32.xlu0 %v403
          %v405 = vpop.xlane.xlu0 %404
          %vm406 = vcmask 3072
          %407 = vst.msk [vmem:[%s217] sm:$0xf] %vm406, %v378
          %vm408 = vcmask 11272
          %409 = vst.msk [vmem:[%s217] sm:$0xf] %vm408, %v387
          %vm410 = vcmask 16400
          %411 = vst.msk [vmem:[%s217] sm:$0x1] %vm410, %v405
        $region44: #{tpu_custom_call.1} parent=27 // pred_fallthru
          _
        %s412 = sand.u32 %s98, 1
        %s413 = scalar_lea.sflag [#allocation7], %s412
        %s414 = sand.u32 %s98, 1
        %s415 = smul.addr %s414, 8
        %s416 = scalar_lea.vmem [#allocation10], %s415
        // Predicated region
        $region45: #{tpu_custom_call.1} parent=27 // pred_check
          %p417 = pneg %p108
        $region46: #{tpu_custom_call.1} parent=27 // pred_check_branch
          %419 = sbr.rel (%p417) target = $region48
        $region47: #{tpu_custom_call.1} parent=27 // pred_region
          %s421 = ssub.s32 128, 128
          %422 = vsyncadd %s413, %s421
          %s423 = smul.addr %s26, 128
          %s424 = scalar_lea.hbm %s2, %s423
          %s426 = sshll.u32 %s416, 4
          %s427 = int_to_ptr.vmem [resolvable:$true] %s426
          %429 = dma.vmem_to_hbm [thread:$0]  %s427, 128, %s424, %s413
        $region48: #{tpu_custom_call.1} parent=27 // pred_fallthru
          _
      $region28: #{tpu_custom_call.1} parent=5 // pred_fallthru
        _
      %p430 = scmp.le.s32.totalorder 2, %s17
      // Predicated region
      $region49: #{tpu_custom_call.1} parent=5 // pred_check
        %p431 = pneg %p430
      $region50: #{tpu_custom_call.1} parent=5 // pred_check_branch
        %433 = sbr.rel (%p431) target = $region52
      $region51: #{tpu_custom_call.1} parent=5 // pred_region
        %s434 = ssub.s32 %s17, 2
        // Predicated region
        $region53: #{tpu_custom_call.1} parent=51 // pred_check
          %p435 = pneg %p114
        $region54: #{tpu_custom_call.1} parent=51 // pred_check_branch
          %437 = sbr.rel (%p435) target = $region56
        $region55: #{tpu_custom_call.1} parent=51 // pred_region
          %s438 = sand.u32 %s99, 1
          %s439 = scalar_lea.sflag [#allocation7], %s438
          %s440 = sand.u32 %s99, 1
          %s441 = smul.addr %s440, 8
          %s442 = scalar_lea.vmem [#allocation10], %s441
          %443 = dma.done %s439, 128
        $region56: #{tpu_custom_call.1} parent=51 // pred_fallthru
          _
      $region52: #{tpu_custom_call.1} parent=5 // pred_fallthru
        _
    $region6: #{tpu_custom_call.1} parent=1 // loop_footer
      %s21 = sadd.s32 1, %s17
    $region7: #{tpu_custom_call.1} parent=1 // loop_footer_branch
      %16 = sbr.rel target = $region3
    $region8: #{tpu_custom_call.1} parent=1 // loop_exit
      _
    %444 = vsyncpa [#allocation6], 1
    %s445 = scalar_lea.sflag [#allocation6], 1
    %446 = vsyncpa %s445, 1
    %447 = vsyncpa [#allocation9], 1
    %s448 = scalar_lea.sflag [#allocation9], 1
    %449 = vsyncpa %s448, 1
    %450 = vsyncpa [#allocation7], 1
    %s451 = scalar_lea.sflag [#allocation7], 1
    %452 = vsyncpa %s451, 1

</llo_original>
